<compile_context>
chip_gen: v7x
topology: tpu7x:2x2x1
jax: 0.10.0
libtpu: 0.0.40
codegen_flags: <defaults>
</compile_context>

<pallas_src>
import jax
import jax.numpy as jnp
from jax import lax
from jax.experimental import pallas as pl
from jax.experimental.pallas import tpu as pltpu


# Target bytes in flight for the HBM row-gather path (covers HBM latency).
_TARGET_INFLIGHT_BYTES = 512 * 1024
# Default VMEM budget for the resident-table fast path (safe on v5e/v6e/v7x
# scoped-VMEM defaults; v7x only has 64 MiB physical VMEM).
_FAST_PATH_VMEM_BUDGET = 12 * 1024 * 1024


def structured_data_embedding(x, table, *, tn=256, use_vmem_table=None,
                              vmem_budget_bytes=_FAST_PATH_VMEM_BUDGET):
    """x: (B, S) integer ids, table: (V, D) -> (B, S, D) gathered embeddings.

    tn:             token rows per grid step (clamped / sublane-aligned below).
    use_vmem_table: None = auto (based on VMEM budget), True/False = force path.
    """
    B, S = x.shape
    V, D = table.shape
    N = B * S
    itemsize = table.dtype.itemsize
    table_bytes = V * D * itemsize

    # ---- path selection: resident-table one-hot matmul vs HBM row gather ----
    if use_vmem_table is None:
        # table double-buffer + nominal one-hot intermediate must fit budget.
        use_vmem_table = (2 * table_bytes + 2 * 256 * V * 4) <= vmem_budget_bytes

    # ---- tile sizing -------------------------------------------------------
    if not use_vmem_table:
        tn = min(tn, 256)          # bounds the fully-unrolled DMA issue loops
    tn = min(tn, 1024)
    if tn >= N:
        tn = ((N + 7) // 8) * 8
    tn = max(8, (tn // 8) * 8)
    # Keep the output double-buffer modest (v7x has only 64 MiB VMEM).
    while tn > 8 and 2 * tn * D * itemsize > 8 * 2**20:
        tn = max(8, ((tn // 2) // 8) * 8)
    if use_vmem_table:
        # Bound the in-kernel one-hot intermediate too.
        while tn > 8 and tn * V * 4 > 4 * 2**20:
            tn = max(8, ((tn // 2) // 8) * 8)

    n_tiles = (N + tn - 1) // tn
    if n_tiles > 1 and n_tiles % 2:
        n_tiles += 1               # balance work across v7x's two TensorCores
    n_padded = n_tiles * tn

    idx = x.reshape(N).astype(jnp.int32)
    if n_padded != N:
        # Pad with id 0 so every access stays in-bounds; padded rows dropped.
        idx = jnp.concatenate([idx, jnp.zeros((n_padded - N,), jnp.int32)])

    if use_vmem_table:
        # ================= FAST PATH: VMEM-resident table ====================
        idx2d = idx.reshape(n_padded, 1)

        def onehot_kernel(idx_ref, table_ref, out_ref):
            ids = idx_ref[...]                                   # (tn, 1) i32
            iota = lax.broadcasted_iota(jnp.int32, (ids.shape[0], V), 1)
            oh = (ids == iota).astype(table_ref.dtype)           # (tn, V)
            out_ref[...] = jnp.dot(
                oh, table_ref[...],
                preferred_element_type=jnp.float32).astype(out_ref.dtype)

        need = (2 * table_bytes + 2 * tn * D * itemsize
                + 2 * tn * V * 4 + 2 * tn * 512)
        out = pl.pallas_call(
            onehot_kernel,
            out_shape=jax.ShapeDtypeStruct((n_padded, D), table.dtype),
            grid=(n_tiles,),
            in_specs=[
                pl.BlockSpec((tn, 1), lambda i: (i, 0)),         # ids tile
                pl.BlockSpec((V, D), lambda i: (0, 0)),          # resident table
            ],
            out_specs=pl.BlockSpec((tn, D), lambda i: (i, 0)),
            compiler_params=pltpu.CompilerParams(
                dimension_semantics=("parallel",),
                vmem_limit_bytes=min(32 * 2**20,
                                     max(16 * 2**20, need + 2 * 2**20)),
            ),
            cost_estimate=pl.CostEstimate(
                flops=2 * n_padded * V * D,
                transcendentals=0,
                bytes_accessed=table_bytes + n_padded * (D * itemsize + 4)),
        )(idx2d, table)
    else:
        # ============ LARGE-TABLE PATH: windowed HBM row gather ==============
        row_bytes = max(D * itemsize, 1)
        # In-flight window sized by bytes (bandwidth-delay product), capped by tn.
        w = max(8, min(tn, _TARGET_INFLIGHT_BYTES // row_bytes))

        def gather_kernel(idx_ref, table_hbm, out_ref, sem):
            base = pl.program_id(0) * tn

            def start_row(row, r):
                pltpu.make_async_copy(
                    table_hbm.at[pl.ds(row, 1), :],
                    out_ref.at[pl.ds(r, 1), :],
                    sem,
                ).start()

            def wait_one():
                # Every in-flight copy moves exactly row_bytes, so any
                # equally-shaped descriptor drains one completion.
                pltpu.make_async_copy(
                    table_hbm.at[pl.ds(0, 1), :],
                    out_ref.at[pl.ds(0, 1), :],
                    sem,
                ).wait()

            # Fully unrolled (static python loops) so the LLO scheduler can
            # co-issue scalar id reads, address math and descriptor pushes.
            for r in range(w):                       # prime the window
                start_row(idx_ref[base + r], r)
            for r in range(w, tn):                   # steady state
                row = idx_ref[base + r]              # read id BEFORE wait
                wait_one()
                start_row(row, r)
            for _ in range(w):                       # drain
                wait_one()

        out = pl.pallas_call(
            gather_kernel,
            out_shape=jax.ShapeDtypeStruct((n_padded, D), table.dtype),
            grid_spec=pltpu.PrefetchScalarGridSpec(
                num_scalar_prefetch=1,                   # ids -> SMEM
                grid=(n_tiles,),
                in_specs=[
                    pl.BlockSpec(memory_space=pl.ANY),   # table stays in HBM
                ],
                out_specs=pl.BlockSpec((tn, D), lambda i, idx_ref: (i, 0)),
                scratch_shapes=[pltpu.SemaphoreType.DMA(())],
            ),
            compiler_params=pltpu.CompilerParams(
                dimension_semantics=("parallel",),
                vmem_limit_bytes=min(
                    32 * 2**20,
                    max(16 * 2**20, 2 * tn * D * itemsize + 4 * 2**20)),
            ),
            cost_estimate=pl.CostEstimate(
                flops=0,
                transcendentals=0,
                bytes_accessed=2 * n_padded * D * itemsize + n_padded * 4),
        )(idx, table)

    if n_padded != N:
        out = out[:N]
    return out.reshape(B, S, D)


if __name__ == "__main__":
    key = jax.random.PRNGKey(0)
    k_idx, k_tab, k_idx2 = jax.random.split(key, 3)

    # Small demo shapes consistent with StructuredDataEmbedding.
    batch, seq = 2, 8
    num_embeddings, embedding_dim = 16, 32

    # Deterministic "parameters": nn.Embedding weight ~ N(0, 1).
    table = jax.random.normal(
        k_tab, (num_embeddings, embedding_dim), dtype=jnp.float32)

    # Integer input (PyTorch forward casts to long; here int32 indices).
    x = jax.random.randint(k_idx, (batch, seq), 0, num_embeddings,
                           dtype=jnp.int32)

    # Fast path (tiny table -> VMEM-resident one-hot matmul), single tile.
    out = jax.block_until_ready(structured_data_embedding(x, table))
    ref = table[x]
    assert out.shape == (batch, seq, embedding_dim)
    assert jnp.allclose(out, ref), "mismatch vs reference gather (fast path)"

    # Fast path, multi-tile grid + padded tail.
    x2 = jax.random.randint(k_idx2, (4, 72), 0, num_embeddings,
                            dtype=jnp.int32)
    out2 = jax.block_until_ready(structured_data_embedding(x2, table, tn=256))
    assert jnp.allclose(out2, table[x2]), "mismatch vs reference (fast, tiled)"

    # Forced large-table path: windowed HBM row-DMA gather.
    out3 = jax.block_until_ready(
        structured_data_embedding(x2, table, tn=128, use_vmem_table=False))
    assert jnp.allclose(out3, table[x2]), "mismatch vs reference (HBM gather)"

    print("KERNEL_OK")
</pallas_src>

<mosaic_0001>
module attributes {stable_mosaic.version = 11 : i64} {
  func.func @onehot_kernel(%arg0: i32, %arg1: memref<16x1xi32, #tpu.memory_space<vmem>>, %arg2: memref<16x32xf32, #tpu.memory_space<vmem>>, %arg3: memref<16x32xf32, #tpu.memory_space<vmem>>) attributes {dimension_semantics = [#tpu.dimension_semantics<parallel>], iteration_bounds = array<i64: 1>, scalar_prefetch = 0 : i64, scratch_operands = 0 : i64, tpu.core_type = #tpu.core_type<tc>, window_params = [{transform_indices = @transform_0, window_bounds = array<i64: 16, 1>}, {pipeline_mode = #tpu.pipeline_mode<synchronous>, transform_indices = @transform_1, window_bounds = array<i64: 16, 32>}, {transform_indices = @transform_2, window_bounds = array<i64: 16, 32>}]} {
    %c0 = arith.constant 0 : index
    %c0_0 = arith.constant 0 : index
    %0 = vector.load %arg1[%c0, %c0_0] : memref<16x1xi32, #tpu.memory_space<vmem>>, vector<16x1xi32>
    %1 = tpu.iota {dimensions = array<i32: 1>} : vector<16x16xi32>
    %2 = vector.broadcast %0 : vector<16x1xi32> to vector<16x16xi32>
    %3 = arith.cmpi eq, %2, %1 : vector<16x16xi32>
    %4 = arith.extui %3 : vector<16x16xi1> to vector<16x16xi32>
    %5 = arith.sitofp %4 : vector<16x16xi32> to vector<16x16xf32>
    %c0_1 = arith.constant 0 : index
    %c0_2 = arith.constant 0 : index
    %6 = vector.load %arg2[%c0_1, %c0_2] : memref<16x32xf32, #tpu.memory_space<vmem>>, vector<16x32xf32>
    %cst = arith.constant dense<0.000000e+00> : vector<16x32xf32>
    %7 = tpu.matmul %5, %6, %cst {dimension_numbers = #tpu.dot_dimension_numbers<[1], [0], [0], [1], [0, 0, 1, 1], [], []>} : vector<16x16xf32>, vector<16x32xf32>, vector<16x32xf32> -> vector<16x32xf32>
    %c0_3 = arith.constant 0 : index
    %c0_4 = arith.constant 0 : index
    %8 = vector.load %arg3[%c0_3, %c0_4] : memref<16x32xf32, #tpu.memory_space<vmem>>, vector<16x32xf32>
    tpu.vector_store %arg3[%c0_3, %c0_4], %7 {strides = array<i32>} : memref<16x32xf32, #tpu.memory_space<vmem>>, vector<16x32xf32>,
    return
  }
  func.func @transform_0(%arg0: i32) -> (i32, i32) {
    %c0_i32 = arith.constant 0 : i32
    %c0_i32_0 = arith.constant 0 : i32
    return %arg0, %c0_i32 : i32, i32
  }
  func.func @transform_1(%arg0: i32) -> (i32, i32) {
    %c0_i32 = arith.constant 0 : i32
    %c0_i32_0 = arith.constant 0 : i32
    %c0_i32_1 = arith.constant 0 : i32
    return %c0_i32, %c0_i32_0 : i32, i32
  }
  func.func @transform_2(%arg0: i32) -> (i32, i32) {
    %c0_i32 = arith.constant 0 : i32
    %c0_i32_0 = arith.constant 0 : i32
    return %arg0, %c0_i32 : i32, i32
  }
}

</mosaic_0001>

<llo_original>
// kernel: tpu_custom_call.1
$region0: #{tpu_custom_call.1}
  #allocation0 [shape = 'u32[]', space=smem, size = 0x4, offset = 0x4, fixed_abs, tag = 'smem constant byte address 0x4 - core index']
  #allocation1 [shape = 'u32[144,128]{1,0:T(1,128)}', space=vmem, size = 0x12000, scoped, tag = 'internal scratch']
  %s0 = inlined_call_operand.vmem [shape: s32[16,1], index: 0, kind: input, shape index: {}]
  %s1 = inlined_call_operand.vmem [shape: f32[16,32], index: 1, kind: input, shape index: {}]
  %s2 = inlined_call_operand.hbm [shape: f32[16,32], index: 2, kind: output, shape index: {}]
  %s3 = sld [smem:[#allocation0]]
  $region18: #{tpu_custom_call.1} parent=0
    _
  %s5 = ssub.s32 1, %s3
  %s6 = scalar_select 0, %s5, %s3
  $region1: #{tpu_custom_call.1} parent=0
    #allocation2 [shape = 'u8[8192]{0}', space=vmem, size = 0x2000, scoped, tag = 'output window, operand 0, single buffered']
    #allocation3 [shape = 's32[1]{0}', space=sflag, size = 0x4, scoped, tag = 'scoped memory for tpu_custom_call.1']
    %7 = vsyncpa [#allocation3], 0
    // Predicated region
    $region2: #{tpu_custom_call.1} parent=1 // pred_check
      _
    $region3: #{tpu_custom_call.1} parent=1 // pred_check_branch
      %9 = sbr.rel (0) target = $region5
    $region4: #{tpu_custom_call.1} parent=1 // pred_region
      _
    $region5: #{tpu_custom_call.1} parent=1 // pred_fallthru
      _
    // Predicated region
    $region6: #{tpu_custom_call.1} parent=1 // pred_check
      _
    $region7: #{tpu_custom_call.1} parent=1 // pred_check_branch
      %11 = sbr.rel (0) target = $region9
    $region8: #{tpu_custom_call.1} parent=1 // pred_region
      _
    $region9: #{tpu_custom_call.1} parent=1 // pred_fallthru
      _
    %v12 = vld [vmem:[%s0] sm:$0xff]
    %v13 = vld [vmem:[%s0 + $0x8] sm:$0xff]
    %v14 = vlaneseq
    %v15 = vand.u32 %v14, 127
    %16 = vset.pattern.permute.xlu0 0
    %17 = vperm.xlu0 %16, %v12
    %v18 = vpop.permute.xlu0 %17
    %19 = vset.pattern.permute.xlu0 0
    %20 = vperm.xlu0 %19, %v13
    %v21 = vpop.permute.xlu0 %20
    %vm22 = vcmp.eq.s32.totalorder %v18, %v15
    %vm23 = vcmp.eq.s32.totalorder %v21, %v15
    %v24 = vsel %vm22, 1, 0
    %v25 = vsel %vm23, 1, 0
    %v26 = vcvt.s32.f32 %v24
    %v27 = vcvt.s32.f32 %v25
    %v28 = vld [vmem:[%s1] sm:$0xff]
    %v29 = vld [vmem:[%s1 + $0x8] sm:$0xff]
    %vm30 = vcmask 130048
    %v32 = vsel %vm30, %v26, 0
    %v35 = vsel %vm30, %v27, 0
    %37 = vmatprep.subr.mxu0 0.0
    %38 = vmatpush1.msra.mxu0 %v28
    %39 = vmatprep.subr.mxu0 0.0
    %40 = vmatpush1.msra.mxu0 %v29
    %41 = vmatprep.subr.mxu0 0.0
    %42 = vmatpush1.msra.mxu0 0.0
    %43 = vmatprep.subr.mxu0 0.0
    %44 = vmatpush1.msra.mxu0 0.0
    %45 = vmatprep.subr.mxu0 0.0
    %46 = vmatpush1.msra.mxu0 0.0
    %47 = vmatprep.subr.mxu0 0.0
    %48 = vmatpush1.msra.mxu0 0.0
    %49 = vmatprep.subr.mxu0 0.0
    %50 = vmatpush1.msra.mxu0 0.0
    %51 = vmatprep.subr.mxu0 0.0
    %52 = vmatpush1.msra.mxu0 0.0
    %53 = vmatprep.subr.mxu0 0.0
    %54 = vmatpush1.msra.mxu0 0.0
    %55 = vmatprep.subr.mxu0 0.0
    %56 = vmatpush1.msra.mxu0 0.0
    %57 = vmatprep.subr.mxu0 0.0
    %58 = vmatpush1.msra.mxu0 0.0
    %59 = vmatprep.subr.mxu0 0.0
    %60 = vmatpush1.msra.mxu0 0.0
    %61 = vmatprep.subr.mxu0 0.0
    %62 = vmatpush1.msra.mxu0 0.0
    %63 = vmatprep.subr.mxu0 0.0
    %64 = vmatpush1.msra.mxu0 0.0
    %65 = vmatprep.subr.mxu0 0.0
    %66 = vmatpush1.msra.mxu0 0.0
    %67 = vmatprep.subr.mxu0 0.0
    %68 = vmatpush1.msra.mxu0 0.0
    %69 = vmatprep.subr.mxu0 0.0
    %70 = vmatpush1.msra.mxu0 0.0
    %71 = vmatprep.subr.mxu0 0.0
    %72 = vmatpush1.msra.mxu0 0.0
    %73 = vmatprep.subr.mxu0 0.0
    %74 = vmatpush1.msra.mxu0 0.0
    %75 = vmatprep.subr.mxu0 0.0
    %76 = vmatpush1.msra.mxu0 0.0
    %77 = vmatprep.subr.mxu0 0.0
    %78 = vmatpush1.msra.mxu0 0.0
    %79 = vmatprep.subr.mxu0 0.0
    %80 = vmatpush1.msra.mxu0 0.0
    %81 = vmatprep.subr.mxu0 0.0
    %82 = vmatpush1.msra.mxu0 0.0
    %83 = vmatprep.subr.mxu0 0.0
    %84 = vmatpush1.msra.mxu0 0.0
    %85 = vmatprep.subr.mxu0 0.0
    %86 = vmatpush1.msra.mxu0 0.0
    %87 = vmatprep.subr.mxu0 0.0
    %88 = vmatpush1.msra.mxu0 0.0
    %89 = vmatprep.subr.mxu0 0.0
    %90 = vmatpush1.msra.mxu0 0.0
    %91 = vmatprep.subr.mxu0 0.0
    %92 = vmatpush1.msra.mxu0 0.0
    %93 = vmatprep.subr.mxu0 0.0
    %94 = vmatpush1.msra.mxu0 0.0
    %95 = vmatprep.subr.mxu0 0.0
    %96 = vmatpush1.msra.mxu0 0.0
    %97 = vmatprep.subr.mxu0 0.0
    %98 = vmatpush1.msra.mxu0 0.0
    %99 = vmatprep.subr.mxu0 0.0
    %100 = vmatpush1.msra.mxu0 0.0
    %101 = vmatprep.mubr.f32.mxu0 0.0
    %102 = vmatmul.mubr.f32.gmra.mrb[0].mxu0 %v32
    %v103 = vpop.f32.mrb[0].mxu0
    %v104 = vadd.f32 0.0, %v103
    %v105 = vpop.f32.mrb[0].mxu0
    %106 = vmatprep.mubr.f32.mxu0 0.0
    %107 = vmatmul.mubr.f32.gmra.mrb[0].mxu0 %v35
    %v108 = vpop.f32.mrb[0].mxu0
    %v109 = vadd.f32 0.0, %v108
    %v110 = vpop.f32.mrb[0].mxu0
    %111 = vdwg.mxu0
    %vm112 = vcmask 261120
    %113 = vst.msk [vmem:[#allocation2] sm:$0xff] %vm112, %v104
    %114 = vst.msk [vmem:[#allocation2 + $0x8] sm:$0xff] %vm112, %v109
    // Predicated region
    $region10: #{tpu_custom_call.1} parent=1 // pred_check
      _
    $region11: #{tpu_custom_call.1} parent=1 // pred_check_branch
      %116 = sbr.rel (0) target = $region13
    $region12: #{tpu_custom_call.1} parent=1 // pred_region
      %s118 = ssub.s32 256, 256
      %119 = vsyncadd [#allocation3], %s118
      %s120 = sshll.u32 [#allocation2], 4
      %s121 = int_to_ptr.vmem [resolvable:$true] %s120
      %126 = dma.vmem_to_hbm [thread:$0]  %s121, 256, %s2, [#allocation3], 128, 128, 8
    $region13: #{tpu_custom_call.1} parent=1 // pred_fallthru
      _
    // Predicated region
    $region14: #{tpu_custom_call.1} parent=1 // pred_check
      _
    $region15: #{tpu_custom_call.1} parent=1 // pred_check_branch
      %128 = sbr.rel (0) target = $region17
    $region16: #{tpu_custom_call.1} parent=1 // pred_region
      %129 = dma.done [#allocation3], 256
    $region17: #{tpu_custom_call.1} parent=1 // pred_fallthru
      _
    %130 = vsyncpa [#allocation3], 1

</llo_original>
